<compile_context>
chip_gen: v6e
topology: v6e:2x2x1
jax: 0.10.0
libtpu: 0.0.40
codegen_flags: <defaults>
</compile_context>

<pallas_src>
import functools
import math

import jax
import jax.numpy as jnp
from jax import lax
from jax.experimental import pallas as pl
from jax.experimental.pallas import tpu as pltpu


# ----------------------------------------------------------------------------
# Pallas kernel: one block = `m` whole batch elements (rows = batch*channel).
# ----------------------------------------------------------------------------
def _eca_kernel(x_ref, w_ref, o_ref, *, C, k, inv_hw):
    # x_ref : (Rb, HW)  activations, Rb = m*C rows, lane-dense HW
    # w_ref : (k,)      Conv1d taps in SMEM (cheap scalar reads)
    # o_ref : (Rb, HW)  gated output
    Rb = x_ref.shape[0]
    r = (k - 1) // 2

    x = x_ref[...]                                            # single copy, input dtype
    xf = x if x.dtype == jnp.float32 else x.astype(jnp.float32)

    # Global average pool over spatial -> (Rb, 1).  Channels stay on the
    # sublane axis so the gate broadcast across HW lanes later is free.
    y = jnp.sum(xf, axis=-1, keepdims=True) * inv_hw          # (Rb, 1) f32

    # 1-D conv across channels as k shifted multiply-adds with zero padding.
    # Row i = b*C + c, so the channel-validity mask both implements the zero
    # padding at the channel edges and blocks cross-batch leakage in-block.
    if r > 0:
        zpad = jnp.zeros((r, 1), jnp.float32)
        y_pad = jnp.concatenate([zpad, y, zpad], axis=0)      # (Rb + 2r, 1)
    else:
        y_pad = y
    c_idx = lax.broadcasted_iota(jnp.int32, (Rb, 1), 0) % C
    conv = jnp.zeros((Rb, 1), jnp.float32)
    for j in range(k):
        d = j - r                                             # out[c] += w[j] * y[c + d]
        shifted = y_pad[j:j + Rb, :]                          # static sublane slice
        valid = jnp.logical_and(c_idx + d >= 0, c_idx + d < C)
        conv = conv + jnp.where(valid, shifted, 0.0) * w_ref[j]

    g = jax.nn.sigmoid(conv)                                  # (Rb, 1) f32

    # Gate in the input dtype so only one full-size copy of x is live; the
    # (Rb, 1) gate broadcasts across the lane axis for free.
    o_ref[...] = (x * g.astype(x.dtype)).astype(o_ref.dtype)


# ----------------------------------------------------------------------------
# Tiling heuristic: whole batch elements per block, ~<=2 MB blocks.
# ----------------------------------------------------------------------------
def _pick_batch_tile(B, C, HW, itemsize, target_bytes=2 << 20):
    row_bytes = C * HW * itemsize                 # bytes per batch element
    divisors = [m for m in range(1, B + 1) if B % m == 0]
    # (8,128) rule for the second-minor block dim: multiple of 8 or full extent.
    legal = [m for m in divisors if (m * C) % 8 == 0 or m == B]
    if not legal:
        legal = [B]
    fitting = [m for m in legal if m * row_bytes <= target_bytes]
    # Largest block that fits the ~2 MB streaming target; else smallest legal.
    return max(fitting) if fitting else min(legal)


# ----------------------------------------------------------------------------
# Parameter helper (matches EcaModule.__init__ when `channels` is given).
# ----------------------------------------------------------------------------
def eca_kernel_size(channels, gamma=2, beta=1):
    t = int(abs(math.log(channels, 2) + beta) / gamma)
    return max(t if t % 2 else t + 1, 3)


# ----------------------------------------------------------------------------
# Wrapper: NCHW in, NCHW out (matches PyTorch module semantics).
# ----------------------------------------------------------------------------
def eca_forward(x_nchw, eca_w):
    B, C, H, W = x_nchw.shape
    HW = H * W
    R = B * C
    itemsize = jnp.dtype(x_nchw.dtype).itemsize

    x2 = x_nchw.reshape(R, HW)                    # free (contiguous) reshape
    w = eca_w.astype(jnp.float32)
    k = int(w.shape[0])

    m = _pick_batch_tile(B, C, HW, itemsize)      # batch elements per block
    Rb = m * C
    n_blocks = B // m
    block_bytes = Rb * HW * itemsize
    # Resident footprint ~= 2 input + 2 output buffers; leave headroom, stay
    # well under v7x's 64 MiB physical VMEM.
    vmem_limit = int(min(48 << 20, max(4 << 20, 6 * block_bytes)))

    # TODO(synk): if a single batch element's (C, H*W) slab is too large for
    # VMEM, a two-pass pipeline (pool over HW tiles, then gate) is required;
    # this single-pass kernel assumes one batch element fits in a block.

    kern = functools.partial(_eca_kernel, C=C, k=k, inv_hw=1.0 / HW)
    out2 = pl.pallas_call(
        kern,
        out_shape=jax.ShapeDtypeStruct((R, HW), x_nchw.dtype),
        grid_spec=pltpu.PrefetchScalarGridSpec(
            num_scalar_prefetch=0,
            grid=(n_blocks,),
            in_specs=[
                pl.BlockSpec((Rb, HW), lambda i: (i, 0)),
                pl.BlockSpec(memory_space=pltpu.MemorySpace.SMEM),
            ],
            out_specs=pl.BlockSpec((Rb, HW), lambda i: (i, 0)),
        ),
        compiler_params=pltpu.CompilerParams(
            dimension_semantics=("parallel",),
            vmem_limit_bytes=vmem_limit,
        ),
    )(x2, w)

    return out2.reshape(B, C, H, W)


# ----------------------------------------------------------------------------
# Pure-JAX reference (correctness check only).
# ----------------------------------------------------------------------------
def eca_reference(x_nchw, eca_w):
    B, C, H, W = x_nchw.shape
    y = jnp.mean(x_nchw.astype(jnp.float32), axis=(2, 3))     # (B, C)
    k = eca_w.shape[0]
    r = (k - 1) // 2
    y_pad = jnp.pad(y, ((0, 0), (r, r)))
    y_conv = sum(eca_w[j] * y_pad[:, j:j + C] for j in range(k))
    g = jax.nn.sigmoid(y_conv)                                # (B, C)
    return x_nchw * g[:, :, None, None].astype(x_nchw.dtype)


# ----------------------------------------------------------------------------
if __name__ == "__main__":
    key = jax.random.PRNGKey(0)
    kx, kw = jax.random.split(key, 2)

    # Small shapes consistent with the module: B=2, C=4, H=W=16.
    B, C, H, W = 2, 4, 16, 16
    x = jax.random.normal(kx, (B, C, H, W), jnp.float32)

    k = eca_kernel_size(C)                                    # = 3 for C=4
    eca_w = jax.random.normal(kw, (k,), jnp.float32) * 0.5    # Conv1d taps

    out = jax.block_until_ready(eca_forward(x, eca_w))

    ref = eca_reference(x, eca_w)
    assert out.shape == (B, C, H, W)
    err = float(jnp.max(jnp.abs(out - ref)))
    assert jnp.allclose(out, ref, rtol=1e-5, atol=1e-5), f"max abs err = {err}"

    print("KERNEL_OK")
</pallas_src>

<mosaic_0001>
module attributes {stable_mosaic.version = 11 : i64} {
  func.func @_eca_kernel(%arg0: i32, %arg1: memref<8x256xf32, #tpu.memory_space<vmem>>, %arg2: memref<3xf32, #tpu.memory_space<smem>>, %arg3: memref<8x256xf32, #tpu.memory_space<vmem>>) attributes {dimension_semantics = [#tpu.dimension_semantics<parallel>], iteration_bounds = array<i64: 1>, scalar_prefetch = 0 : i64, scratch_operands = 0 : i64, tpu.core_type = #tpu.core_type<tc>, window_params = [{transform_indices = @transform_0, window_bounds = array<i64: 8, 256>}, {transform_indices = @transform_1, window_bounds = array<i64: 3>}, {transform_indices = @transform_2, window_bounds = array<i64: 8, 256>}]} {
    %c0 = arith.constant 0 : index
    %c0_0 = arith.constant 0 : index
    %0 = vector.load %arg1[%c0, %c0_0] : memref<8x256xf32, #tpu.memory_space<vmem>>, vector<8x256xf32>
    %cst = arith.constant dense<0.000000e+00> : vector<8xf32>
    %1 = vector.multi_reduction <add>, %0, %cst [1] : vector<8x256xf32> to vector<8xf32>
    %2 = vector.shape_cast %1 : vector<8xf32> to vector<8x1xf32>
    %cst_1 = arith.constant 3.906250e-03 : f32
    %3 = vector.broadcast %cst_1 : f32 to vector<8x1xf32>
    %4 = arith.mulf %2, %3 : vector<8x1xf32>
    %cst_2 = arith.constant 0.000000e+00 : f32
    %5 = vector.broadcast %cst_2 : f32 to vector<1x1xf32>
    %6 = tpu.concatenate %5, %4, %5 in 0 : vector<1x1xf32>, vector<8x1xf32>, vector<1x1xf32> -> vector<10x1xf32>
    %7 = tpu.iota {dimensions = array<i32: 0>} : vector<8x1xi32>
    %c4_i32 = arith.constant 4 : i32
    %c0_i32 = arith.constant 0 : i32
    %8 = arith.cmpi eq, %c4_i32, %c0_i32 : i32
    %c1_i32 = arith.constant 1 : i32
    %9 = arith.select %8, %c1_i32, %c4_i32 : i32
    %10 = vector.broadcast %9 : i32 to vector<8x1xi32>
    %11 = arith.remsi %7, %10 : vector<8x1xi32>
    %c0_i32_3 = arith.constant 0 : i32
    %12 = vector.broadcast %c0_i32_3 : i32 to vector<8x1xi32>
    %13 = arith.cmpi ne, %11, %12 : vector<8x1xi32>
    %c0_i32_4 = arith.constant 0 : i32
    %14 = vector.broadcast %c0_i32_4 : i32 to vector<8x1xi32>
    %15 = arith.cmpi slt, %11, %14 : vector<8x1xi32>
    %c0_i32_5 = arith.constant 0 : i32
    %16 = arith.cmpi slt, %9, %c0_i32_5 : i32
    %17 = vector.broadcast %16 : i1 to vector<8x1xi1>
    %18 = vector.broadcast %17 : vector<8x1xi1> to vector<8x1xi1>
    %19 = arith.xori %15, %18 : vector<8x1xi1>
    %20 = arith.andi %19, %13 : vector<8x1xi1>
    %21 = vector.broadcast %9 : i32 to vector<8x1xi32>
    %22 = arith.addi %11, %21 : vector<8x1xi32>
    %23 = arith.select %20, %22, %11 : vector<8x1xi1>, vector<8x1xi32>
    %cst_6 = arith.constant 0.000000e+00 : f32
    %24 = vector.broadcast %cst_6 : f32 to vector<8x1xf32>
    %25 = vector.extract_strided_slice %6 {offsets = [0, 0], sizes = [8, 1], strides = [1, 1]} : vector<10x1xf32> to vector<8x1xf32>
    %c-1_i32 = arith.constant -1 : i32
    %26 = vector.broadcast %c-1_i32 : i32 to vector<8x1xi32>
    %27 = arith.addi %23, %26 : vector<8x1xi32>
    %c0_i32_7 = arith.constant 0 : i32
    %28 = vector.broadcast %c0_i32_7 : i32 to vector<8x1xi32>
    %29 = arith.cmpi sge, %27, %28 : vector<8x1xi32>
    %c-1_i32_8 = arith.constant -1 : i32
    %30 = vector.broadcast %c-1_i32_8 : i32 to vector<8x1xi32>
    %31 = arith.addi %23, %30 : vector<8x1xi32>
    %c4_i32_9 = arith.constant 4 : i32
    %32 = vector.broadcast %c4_i32_9 : i32 to vector<8x1xi32>
    %33 = arith.cmpi slt, %31, %32 : vector<8x1xi32>
    %34 = arith.andi %29, %33 : vector<8x1xi1>
    %cst_10 = arith.constant 0.000000e+00 : f32
    %35 = vector.broadcast %cst_10 : f32 to vector<8x1xf32>
    %36 = arith.select %34, %25, %35 : vector<8x1xi1>, vector<8x1xf32>
    %c0_11 = arith.constant 0 : index
    %37 = memref.load %arg2[%c0_11] : memref<3xf32, #tpu.memory_space<smem>>
    %38 = vector.broadcast %37 : f32 to vector<8x1xf32>
    %39 = arith.mulf %36, %38 : vector<8x1xf32>
    %40 = arith.addf %24, %39 : vector<8x1xf32>
    %41 = vector.extract_strided_slice %6 {offsets = [1, 0], sizes = [8, 1], strides = [1, 1]} : vector<10x1xf32> to vector<8x1xf32>
    %c0_i32_12 = arith.constant 0 : i32
    %42 = vector.broadcast %c0_i32_12 : i32 to vector<8x1xi32>
    %43 = arith.addi %23, %42 : vector<8x1xi32>
    %c0_i32_13 = arith.constant 0 : i32
    %44 = vector.broadcast %c0_i32_13 : i32 to vector<8x1xi32>
    %45 = arith.cmpi sge, %43, %44 : vector<8x1xi32>
    %c0_i32_14 = arith.constant 0 : i32
    %46 = vector.broadcast %c0_i32_14 : i32 to vector<8x1xi32>
    %47 = arith.addi %23, %46 : vector<8x1xi32>
    %c4_i32_15 = arith.constant 4 : i32
    %48 = vector.broadcast %c4_i32_15 : i32 to vector<8x1xi32>
    %49 = arith.cmpi slt, %47, %48 : vector<8x1xi32>
    %50 = arith.andi %45, %49 : vector<8x1xi1>
    %cst_16 = arith.constant 0.000000e+00 : f32
    %51 = vector.broadcast %cst_16 : f32 to vector<8x1xf32>
    %52 = arith.select %50, %41, %51 : vector<8x1xi1>, vector<8x1xf32>
    %c1 = arith.constant 1 : index
    %53 = memref.load %arg2[%c1] : memref<3xf32, #tpu.memory_space<smem>>
    %54 = vector.broadcast %53 : f32 to vector<8x1xf32>
    %55 = arith.mulf %52, %54 : vector<8x1xf32>
    %56 = arith.addf %40, %55 : vector<8x1xf32>
    %57 = vector.extract_strided_slice %6 {offsets = [2, 0], sizes = [8, 1], strides = [1, 1]} : vector<10x1xf32> to vector<8x1xf32>
    %c1_i32_17 = arith.constant 1 : i32
    %58 = vector.broadcast %c1_i32_17 : i32 to vector<8x1xi32>
    %59 = arith.addi %23, %58 : vector<8x1xi32>
    %c0_i32_18 = arith.constant 0 : i32
    %60 = vector.broadcast %c0_i32_18 : i32 to vector<8x1xi32>
    %61 = arith.cmpi sge, %59, %60 : vector<8x1xi32>
    %c1_i32_19 = arith.constant 1 : i32
    %62 = vector.broadcast %c1_i32_19 : i32 to vector<8x1xi32>
    %63 = arith.addi %23, %62 : vector<8x1xi32>
    %c4_i32_20 = arith.constant 4 : i32
    %64 = vector.broadcast %c4_i32_20 : i32 to vector<8x1xi32>
    %65 = arith.cmpi slt, %63, %64 : vector<8x1xi32>
    %66 = arith.andi %61, %65 : vector<8x1xi1>
    %cst_21 = arith.constant 0.000000e+00 : f32
    %67 = vector.broadcast %cst_21 : f32 to vector<8x1xf32>
    %68 = arith.select %66, %57, %67 : vector<8x1xi1>, vector<8x1xf32>
    %c2 = arith.constant 2 : index
    %69 = memref.load %arg2[%c2] : memref<3xf32, #tpu.memory_space<smem>>
    %70 = vector.broadcast %69 : f32 to vector<8x1xf32>
    %71 = arith.mulf %68, %70 : vector<8x1xf32>
    %72 = arith.addf %56, %71 : vector<8x1xf32>
    %73 = arith.negf %72 : vector<8x1xf32>
    %74 = math.exp %73 : vector<8x1xf32>
    %cst_22 = arith.constant 1.000000e+00 : f32
    %75 = vector.broadcast %cst_22 : f32 to vector<8x1xf32>
    %76 = arith.addf %75, %74 : vector<8x1xf32>
    %77 = arith.divf %75, %76 : vector<8x1xf32>
    %78 = vector.broadcast %77 : vector<8x1xf32> to vector<8x256xf32>
    %79 = arith.mulf %0, %78 : vector<8x256xf32>
    %c0_23 = arith.constant 0 : index
    %c0_24 = arith.constant 0 : index
    %80 = vector.load %arg3[%c0_23, %c0_24] : memref<8x256xf32, #tpu.memory_space<vmem>>, vector<8x256xf32>
    tpu.vector_store %arg3[%c0_23, %c0_24], %79 {strides = array<i32>} : memref<8x256xf32, #tpu.memory_space<vmem>>, vector<8x256xf32>,
    return
  }
  func.func @transform_0(%arg0: i32) -> (i32, i32) {
    %c0_i32 = arith.constant 0 : i32
    %c0_i32_0 = arith.constant 0 : i32
    return %arg0, %c0_i32 : i32, i32
  }
  func.func @transform_1(%arg0: i32) -> i32 {
    %c0_i32 = arith.constant 0 : i32
    %c0_i32_0 = arith.constant 0 : i32
    return %c0_i32 : i32
  }
  func.func @transform_2(%arg0: i32) -> (i32, i32) {
    %c0_i32 = arith.constant 0 : i32
    %c0_i32_0 = arith.constant 0 : i32
    return %arg0, %c0_i32 : i32, i32
  }
}

</mosaic_0001>

<llo_original>
// kernel: tpu_custom_call.1
$region0: #{tpu_custom_call.1}
  #allocation0 [shape = 'u32[]', space=smem, size = 0x4, offset = 0x4, fixed_abs, tag = 'smem constant byte address 0x4 - core index']
  #allocation1 [shape = 'u32[144,128]{1,0:T(1,128)}', space=vmem, size = 0x12000, scoped, tag = 'internal scratch']
  %s0 = inlined_call_operand.hbm [shape: f32[8,256], index: 0, kind: input, shape index: {}]
  %s1 = inlined_call_operand.vmem [shape: f32[3], index: 1, kind: input, shape index: {}]
  %s2 = inlined_call_operand.hbm [shape: f32[8,256], index: 2, kind: output, shape index: {}]
  %s3 = sld [smem:[#allocation0]]
  $region26: #{tpu_custom_call.1} parent=0
    _
  %s5 = ssub.s32 1, %s3
  %s6 = scalar_select 0, %s5, %s3
  $region1: #{tpu_custom_call.1} parent=0
    #allocation2 [shape = 'u8[8192]{0}', space=vmem, size = 0x2000, scoped, tag = 'input window, operand 0, single buffered']
    #allocation3 [shape = 's32[1]{0}', space=sflag, size = 0x4, scoped, tag = 'scoped memory for tpu_custom_call.1']
    #allocation4 [shape = 's32[1]{0}', space=sflag, size = 0x4, scoped, tag = 'scoped memory for tpu_custom_call.1']
    #allocation5 [shape = 's32[1]{0}', space=sflag, size = 0x4, scoped, tag = 'scoped memory for tpu_custom_call.1']
    #allocation6 [shape = 'u8[512]{0}', space=smem, size = 0x200, scoped, tag = 'input window, operand 1, single buffered']
    #allocation7 [shape = 'u8[8192]{0}', space=vmem, size = 0x2000, scoped, tag = 'output window, operand 0, single buffered']
    %7 = vsyncpa [#allocation3], 0
    %8 = vsyncpa [#allocation5], 0
    %9 = vsyncpa [#allocation4], 0
    // Predicated region
    $region2: #{tpu_custom_call.1} parent=1 // pred_check
      _
    $region3: #{tpu_custom_call.1} parent=1 // pred_check_branch
      %11 = sbr.rel (0) target = $region5
    $region4: #{tpu_custom_call.1} parent=1 // pred_region
      %s13 = ssub.s32 256, 256
      %14 = vsyncadd [#allocation3], %s13
      %s16 = sshll.u32 [#allocation2], 4
      %s17 = int_to_ptr.vmem [resolvable:$true] %s16
      %19 = dma.hbm_to_vmem [thread:$0]  %s0, 256, %s17, [#allocation3]
    $region5: #{tpu_custom_call.1} parent=1 // pred_fallthru
      _
    // Predicated region
    $region6: #{tpu_custom_call.1} parent=1 // pred_check
      _
    $region7: #{tpu_custom_call.1} parent=1 // pred_check_branch
      %21 = sbr.rel (0) target = $region9
    $region8: #{tpu_custom_call.1} parent=1 // pred_region
      %s23 = ssub.s32 16, 16
      %24 = vsyncadd [#allocation5], %s23
      %s26 = sshll.u32 %s1, 4
      %s27 = int_to_ptr.vmem [resolvable:$true] %s26
      %29 = dma.vmem_to_smem %s27, 16, [#allocation6], [#allocation5]
    $region9: #{tpu_custom_call.1} parent=1 // pred_fallthru
      _
    // Predicated region
    $region10: #{tpu_custom_call.1} parent=1 // pred_check
      _
    $region11: #{tpu_custom_call.1} parent=1 // pred_check_branch
      %31 = sbr.rel (0) target = $region13
    $region12: #{tpu_custom_call.1} parent=1 // pred_region
      %32 = dma.done [#allocation3], 256
    $region13: #{tpu_custom_call.1} parent=1 // pred_fallthru
      _
    // Predicated region
    $region14: #{tpu_custom_call.1} parent=1 // pred_check
      _
    $region15: #{tpu_custom_call.1} parent=1 // pred_check_branch
      %34 = sbr.rel (0) target = $region17
    $region16: #{tpu_custom_call.1} parent=1 // pred_region
      %35 = dma.done [#allocation5], 16
    $region17: #{tpu_custom_call.1} parent=1 // pred_fallthru
      _
    %36 = sfence
    %v37 = vld [vmem:[#allocation2] sm:$0xff]
    %v38 = vld [vmem:[#allocation2 + $0x8] sm:$0xff]
    %v39 = vadd.f32 %v37, %v38
    %40 = vadd.xlane.f32.xlu0 %v39
    %v41 = vpop.xlane.xlu0 %40
    %v42 = vmul.f32 %v41, 0.00390625
    %v44 = vrot.slane %v42, 7
    %vm46 = vcmask 1040384
    %v47 = vsel %vm46, 0.0, %v44
    %v48 = vsel %vm46, %v44, 0.0
    %v49 = vlaneseq
    %v50 = vshrl.u32 %v49, 7
    %vm51 = vcmp.lt.s32.totalorder %v50, 0
    %v52 = vsub.s32 0, %v50
    %v53 = vsel %vm51, %v52, %v50
    %v54 = vshrl.u32 %v53, 2
    %v55 = vand.u32 %v53, 3
    %v56 = vsub.s32 0, %v55
    %v57 = vsel %vm51, %v56, %v55
    %vm58 = vcmp.ne.s32.totalorder %v57, 0
    %vm59 = vcmp.lt.s32.totalorder %v57, 0
    %vm60 = vmand %vm59, %vm58
    %v61 = vadd.s32 %v57, 4
    %v62 = vsel %vm60, %v61, %v57
    %v63 = vadd.s32 %v62, 4294967295
    %vm64 = vcmp.ge.s32.totalorder %v63, 0
    %vm65 = vcmp.lt.s32.totalorder %v63, 4
    %vm66 = vmand %vm64, %vm65
    %v67 = vsel %vm66, %v47, 0.0
    %s68 = sld [smem:[#allocation6]]
    %v69 = vstv %s68
    %v70 = vmul.f32 %v67, %v69
    %v71 = vadd.f32 %v70, 0.0
    %vm72 = vcmp.ge.s32.totalorder %v62, 0
    %vm73 = vcmp.lt.s32.totalorder %v62, 4
    %vm74 = vmand %vm72, %vm73
    %vm77 = vcmask 1046528
    %v78 = vrot.slane %v47, 1
    %v79 = vrot.slane %v48, 1
    %v80 = vsel %vm77, %v78, %v79
    %v82 = vsel %vm74, %v80, 0.0
    %s83 = sld [smem:[#allocation6 + $0x1]]
    %v84 = vstv %s83
    %v85 = vmul.f32 %v82, %v84
    %v86 = vadd.f32 %v71, %v85
    %v87 = vadd.s32 %v62, 1
    %vm88 = vcmp.ge.s32.totalorder %v87, 0
    %vm89 = vcmp.lt.s32.totalorder %v87, 4
    %vm90 = vmand %vm88, %vm89
    %vm91 = vcmask 1045504
    %v92 = vrot.slane %v47, 2
    %v93 = vrot.slane %v48, 2
    %v94 = vsel %vm91, %v92, %v93
    %v96 = vsel %vm90, %v94, 0.0
    %s97 = sld [smem:[#allocation6 + $0x2]]
    %v98 = vstv %s97
    %v99 = vmul.f32 %v96, %v98
    %v100 = vadd.f32 %v86, %v99
    %v101 = vxor.u32 %v100, 2147483648
    %v102 = vmul.f32 %v101, 1.442695
    %v103 = vpow.pop %v102
    %v104 = vadd.f32 %v103, 1.0
    %v105 = vrcp.pop %v104
    %v106 = vmul.f32 1.0, %v105
    %108 = vset.pattern.permute.xlu0 0
    %109 = vperm.xlu0 %108, %v106
    %v110 = vpop.permute.xlu0 %109
    %v112 = vmul.f32 %v37, %v110
    %v113 = vmul.f32 %v38, %v110
    %114 = vst [vmem:[#allocation7] sm:$0xff] %v112
    %115 = vst [vmem:[#allocation7 + $0x8] sm:$0xff] %v113
    // Predicated region
    $region18: #{tpu_custom_call.1} parent=1 // pred_check
      _
    $region19: #{tpu_custom_call.1} parent=1 // pred_check_branch
      %117 = sbr.rel (0) target = $region21
    $region20: #{tpu_custom_call.1} parent=1 // pred_region
      %s119 = ssub.s32 256, 256
      %120 = vsyncadd [#allocation4], %s119
      %s122 = sshll.u32 [#allocation7], 4
      %s123 = int_to_ptr.vmem [resolvable:$true] %s122
      %125 = dma.vmem_to_hbm [thread:$0]  %s123, 256, %s2, [#allocation4]
    $region21: #{tpu_custom_call.1} parent=1 // pred_fallthru
      _
    // Predicated region
    $region22: #{tpu_custom_call.1} parent=1 // pred_check
      _
    $region23: #{tpu_custom_call.1} parent=1 // pred_check_branch
      %127 = sbr.rel (0) target = $region25
    $region24: #{tpu_custom_call.1} parent=1 // pred_region
      %128 = dma.done [#allocation4], 256
    $region25: #{tpu_custom_call.1} parent=1 // pred_fallthru
      _
    %129 = vsyncpa [#allocation3], 1
    %130 = vsyncpa [#allocation4], 1
    %131 = vsyncpa [#allocation5], 1

</llo_original>
